<compile_context>
chip_gen: v7x
topology: tpu7x:2x2x1
jax: 0.10.0
libtpu: 0.0.40
codegen_flags: <defaults>
</compile_context>

<pallas_src>
import functools

import jax
import jax.numpy as jnp
from jax.experimental import pallas as pl
from jax.experimental.pallas import tpu as pltpu

_TARGET_F32_BLOCK_BYTES = 8 * 1024 * 1024   # ~8 MiB f32 working set per block
_VMEM_LIMIT_BYTES = 48 * 1024 * 1024        # above scoped default on all gens,
                                            # under v7x's 64 MiB physical VMEM


def _ceil_to(x, m):
    return ((x + m - 1) // m) * m


# --------------------------------------------------------------------------
# Path A: groups of whole planes per block, lane dim = H*W.
# --------------------------------------------------------------------------
def _grad_kernel_planes(dxm_ref, dym_ref, x_ref, out_ref, *, penalty, P, pb, W):
    g = pl.program_id(0)
    x = x_ref[...].astype(jnp.float32)                 # (pb, HW), lane-dense
    HW = x.shape[1]

    # Kill garbage sublanes of the (possibly partial) last block with a
    # select — OOB VMEM reads may be NaN/Inf and 0 * NaN == NaN.
    valid = P - g * pb
    rows = jax.lax.broadcasted_iota(jnp.int32, (pb, 1), 0)
    x = jnp.where(rows < valid, x, 0.0)

    # rolled[p, j] = x[p, (j + k) mod HW]; each sublane (plane) rotates alone.
    dx = pltpu.roll(x, HW - 1, 1) - x                  # x[h, w+1] - x[h, w]
    dy = pltpu.roll(x, HW - W, 1) - x                  # x[h+1, w] - x[h, w]
    if penalty == "l2":
        dx = dx * dx
        dy = dy * dy
    else:
        dx = jnp.abs(dx)
        dy = jnp.abs(dy)

    # Precomputed lane-validity masks ((1, HW), resident in VMEM): dx drops
    # the last column of each row, dy drops the last row of each plane.
    out_ref[0, 0] = jnp.sum(dx * dxm_ref[...])
    out_ref[0, 1] = jnp.sum(dy * dym_ref[...])


# --------------------------------------------------------------------------
# Path B: one plane at a time, tiled into row chunks of `th` rows.
# --------------------------------------------------------------------------
def _grad_kernel_rows(x_ref, out_ref, *, penalty, H, th):
    gh = pl.program_id(1)
    x = x_ref[0].astype(jnp.float32)                   # (th, W)
    W = x.shape[1]

    row0 = gh * th
    rows = jax.lax.broadcasted_iota(jnp.int32, (th, 1), 0) + row0   # global row
    # Zero garbage rows of a partial last chunk (select, not multiply).
    x = jnp.where(rows < H, x, 0.0)

    dx = pltpu.roll(x, W - 1, 1) - x                   # x[., w+1] - x[., w]
    dy = pltpu.roll(x, th - 1, 0) - x                  # x[r+1, .] - x[r, .]
    if penalty == "l2":
        dx = dx * dx
        dy = dy * dy
    else:
        dx = jnp.abs(dx)
        dy = jnp.abs(dy)

    cols = jax.lax.broadcasted_iota(jnp.int32, (1, W), 1)
    dx_mask = (cols < (W - 1)).astype(jnp.float32)                 # (1, W)
    # dy valid iff the pair stays inside this chunk AND inside the plane.
    dy_last = jnp.minimum(row0 + th, H) - 1
    dy_mask = (rows < dy_last).astype(jnp.float32)                 # (th, 1)

    out_ref[0, 0] = jnp.sum(dx * dx_mask)
    out_ref[0, 1] = jnp.sum(dy * dy_mask)


# --------------------------------------------------------------------------
# Wrapper
# --------------------------------------------------------------------------
def grad_loss(y_pred, y_true=None, penalty="l1", loss_mult=None, *,
              target_block_bytes=None):
    """Pallas implementation of Grad.forward (y_true is unused, as in PyTorch)."""
    del y_true  # the reference forward never reads y_true
    if penalty not in ("l1", "l2"):
        raise ValueError(f"penalty must be 'l1' or 'l2', got {penalty!r}")

    N, C, H, W = y_pred.shape
    P, HW = N * C, H * W
    target = (_TARGET_F32_BLOCK_BYTES if target_block_bytes is None
              else int(target_block_bytes))
    plane_f32_bytes = HW * 4                     # size blocks on f32 working set

    cost = pl.CostEstimate(
        flops=8 * P * HW,
        transcendentals=0,
        bytes_accessed=P * HW * y_pred.dtype.itemsize + 2 * HW * 4,
    )

    if plane_f32_bytes <= target:
        # ---------------- Path A: whole planes per block --------------------
        x2 = y_pred.reshape(P, HW)               # free: NCHW is row-major
        p8 = _ceil_to(P, 8)
        pb = max(8, (target // plane_f32_bytes) // 8 * 8)
        pb = min(pb, p8)
        if pb >= p8 and P > 8:
            # Split into >= 2 blocks so both v7x TensorCores get work.
            pb = _ceil_to((P + 1) // 2, 8)
        gp = -(-P // pb)

        col = jnp.arange(HW, dtype=jnp.int32)
        dx_mask = ((col % W) != (W - 1)).astype(jnp.float32).reshape(1, HW)
        dy_mask = (col < (H - 1) * W).astype(jnp.float32).reshape(1, HW)

        kernel = functools.partial(_grad_kernel_planes,
                                   penalty=penalty, P=P, pb=pb, W=W)
        partials = pl.pallas_call(
            kernel,
            out_shape=jax.ShapeDtypeStruct((gp, 2), jnp.float32),
            grid_spec=pltpu.PrefetchScalarGridSpec(
                num_scalar_prefetch=0,
                grid=(gp,),
                in_specs=[
                    pl.BlockSpec((1, HW), lambda g: (0, 0)),   # dx mask (resident)
                    pl.BlockSpec((1, HW), lambda g: (0, 0)),   # dy mask (resident)
                    pl.BlockSpec((pb, HW), lambda g: (g, 0)),  # planes
                ],
                out_specs=pl.BlockSpec((1, 2), lambda g: (g, 0),
                                       memory_space=pltpu.MemorySpace.SMEM),
            ),
            compiler_params=pltpu.CompilerParams(
                dimension_semantics=("parallel",),
                vmem_limit_bytes=_VMEM_LIMIT_BYTES,
            ),
            cost_estimate=cost,
        )(dx_mask, dy_mask, x2)
        dx_sum = jnp.sum(partials[:, 0])
        dy_sum = jnp.sum(partials[:, 1])
    else:
        # ---------------- Path B: row-chunk tiling for large planes ---------
        x3 = y_pred.reshape(P, H, W)
        th = max(8, (target // (W * 4)) // 8 * 8)
        th = min(th, _ceil_to(H, 8))
        gh = -(-H // th)

        kernel = functools.partial(_grad_kernel_rows, penalty=penalty, H=H, th=th)
        partials = pl.pallas_call(
            kernel,
            out_shape=jax.ShapeDtypeStruct((P * gh, 2), jnp.float32),
            grid_spec=pltpu.PrefetchScalarGridSpec(
                num_scalar_prefetch=0,
                grid=(P, gh),
                in_specs=[pl.BlockSpec((1, th, W), lambda p, h: (p, h, 0))],
                out_specs=pl.BlockSpec((1, 2), lambda p, h: (p * gh + h, 0),
                                       memory_space=pltpu.MemorySpace.SMEM),
            ),
            compiler_params=pltpu.CompilerParams(
                dimension_semantics=("parallel", "parallel"),
                vmem_limit_bytes=_VMEM_LIMIT_BYTES,
            ),
            cost_estimate=cost,
        )(x3)
        dx_sum = jnp.sum(partials[:, 0])
        dy_sum = jnp.sum(partials[:, 1])

        # dy pairs straddling a row-chunk seam: last row of chunk c-1 with the
        # first row of chunk c.  Only gh-1 rows per plane — negligible cost.
        if gh > 1:
            seam = th * jnp.arange(1, gh)                     # all < H
            a = y_pred[:, :, seam - 1, :].astype(jnp.float32)
            b = y_pred[:, :, seam, :].astype(jnp.float32)
            d = b - a
            d = d * d if penalty == "l2" else jnp.abs(d)
            dy_sum = dy_sum + jnp.sum(d)

    # Note: H == 1 or W == 1 divides by zero -> NaN, matching torch.mean([]).
    dx_mean = dx_sum / jnp.float32(P * H * (W - 1))
    dy_mean = dy_sum / jnp.float32(P * (H - 1) * W)
    grad = (dx_mean + dy_mean) * jnp.float32(0.5)
    if loss_mult is not None:
        grad = grad * jnp.float32(loss_mult)
    return grad


def _grad_loss_ref(y_pred, penalty="l1", loss_mult=None):
    """Pure-JAX reference (mirrors the PyTorch forward exactly)."""
    dy = jnp.abs(y_pred[:, :, 1:, :] - y_pred[:, :, :-1, :])
    dx = jnp.abs(y_pred[:, :, :, 1:] - y_pred[:, :, :, :-1])
    if penalty == "l2":
        dy = dy * dy
        dx = dx * dx
    d = jnp.mean(dx) + jnp.mean(dy)
    grad = d / 2.0
    if loss_mult is not None:
        grad = grad * loss_mult
    return grad


if __name__ == "__main__":
    key = jax.random.PRNGKey(0)
    keys = jax.random.split(key, 6)

    # Small NCHW inputs, consistent with an image-registration flow field.
    cases = [
        # (shape, target_block_bytes override)
        ((2, 4, 16, 16), None),        # base case, path A, single block
        ((1, 3, 16, 16), None),        # P not a multiple of 8 -> tail masking
        ((2, 16, 16, 16), None),       # P split into >= 2 blocks (megacore)
        ((1, 2, 64, 128), 16 * 1024),  # path B: row-chunk tiling + 1 seam/plane
        ((1, 1, 72, 128), 16 * 1024),  # path B: partial last row chunk + seams
    ]
    y_true = jax.random.normal(keys[5], (2, 4, 16, 16), dtype=jnp.float32)  # unused

    ok = True
    for i, (shape, tb) in enumerate(cases):
        xin = jax.random.normal(keys[i], shape, dtype=jnp.float32)
        for penalty, loss_mult in (("l1", None), ("l2", 0.5)):
            out = grad_loss(xin, y_true, penalty=penalty, loss_mult=loss_mult,
                            target_block_bytes=tb)
            out = jax.block_until_ready(out)
            ref = _grad_loss_ref(xin, penalty=penalty, loss_mult=loss_mult)
            if not jnp.allclose(out, ref, rtol=1e-4, atol=1e-5):
                ok = False
                print(f"MISMATCH shape={shape} penalty={penalty} "
                      f"target={tb}: kernel={out} ref={ref}")

    if ok:
        print("KERNEL_OK")
</pallas_src>

<mosaic_0001>
module attributes {stable_mosaic.version = 11 : i64} {
  func.func @_grad_kernel_planes(%arg0: i32, %arg1: memref<1x256xf32, #tpu.memory_space<vmem>>, %arg2: memref<1x256xf32, #tpu.memory_space<vmem>>, %arg3: memref<8x256xf32, #tpu.memory_space<vmem>>, %arg4: memref<1x2xf32, #tpu.memory_space<smem>>) attributes {dimension_semantics = [#tpu.dimension_semantics<parallel>], iteration_bounds = array<i64: 1>, scalar_prefetch = 0 : i64, scratch_operands = 0 : i64, tpu.core_type = #tpu.core_type<tc>, window_params = [{pipeline_mode = #tpu.pipeline_mode<synchronous>, transform_indices = @transform_0, window_bounds = array<i64: 1, 256>}, {pipeline_mode = #tpu.pipeline_mode<synchronous>, transform_indices = @transform_1, window_bounds = array<i64: 1, 256>}, {transform_indices = @transform_2, window_bounds = array<i64: 8, 256>}, {transform_indices = @transform_3, window_bounds = array<i64: 1, 2>}]} {
    %c0 = arith.constant 0 : index
    %c0_0 = arith.constant 0 : index
    %0 = vector.load %arg3[%c0, %c0_0] : memref<8x256xf32, #tpu.memory_space<vmem>>, vector<8x256xf32>
    %c8_i32 = arith.constant 8 : i32
    %1 = arith.muli %arg0, %c8_i32 : i32
    %c8_i32_1 = arith.constant 8 : i32
    %2 = arith.subi %c8_i32_1, %1 : i32
    %3 = tpu.iota {dimensions = array<i32: 0>} : vector<8x1xi32>
    %4 = vector.broadcast %2 : i32 to vector<8x1xi32>
    %5 = arith.cmpi slt, %3, %4 : vector<8x1xi32>
    %cst = arith.constant 0.000000e+00 : f32
    %6 = vector.shape_cast %5 : vector<8x1xi1> to vector<8x1xi1>
    %7 = vector.broadcast %6 : vector<8x1xi1> to vector<8x256xi1>
    %8 = vector.broadcast %cst : f32 to vector<8x256xf32>
    %9 = arith.select %7, %0, %8 : vector<8x256xi1>, vector<8x256xf32>
    %c255_i32 = arith.constant 255 : i32
    %10 = tpu.dynamic_rotate %9 by %c255_i32 dim 1 : vector<8x256xf32>, i32 -> vector<8x256xf32>
    %11 = arith.subf %10, %9 : vector<8x256xf32>
    %c240_i32 = arith.constant 240 : i32
    %12 = tpu.dynamic_rotate %9 by %c240_i32 dim 1 : vector<8x256xf32>, i32 -> vector<8x256xf32>
    %13 = arith.subf %12, %9 : vector<8x256xf32>
    %14 = math.absf %11 : vector<8x256xf32>
    %15 = math.absf %13 : vector<8x256xf32>
    %c0_2 = arith.constant 0 : index
    %c0_3 = arith.constant 0 : index
    %16 = vector.load %arg1[%c0_2, %c0_3] : memref<1x256xf32, #tpu.memory_space<vmem>>, vector<1x256xf32>
    %17 = vector.broadcast %16 : vector<1x256xf32> to vector<8x256xf32>
    %18 = arith.mulf %14, %17 : vector<8x256xf32>
    %19 = vector.shape_cast %18 : vector<8x256xf32> to vector<1x8x256xf32>
    %cst_4 = arith.constant dense<0.000000e+00> : vector<1xf32>
    %20 = vector.multi_reduction <add>, %19, %cst_4 [1, 2] : vector<1x8x256xf32> to vector<1xf32>
    %21 = vector.shape_cast %20 : vector<1xf32> to vector<1x1x1xf32>
    %22 = vector.extract %21[0, 0, 0] : f32 from vector<1x1x1xf32>
    %c0_5 = arith.constant 0 : index
    %c0_6 = arith.constant 0 : index
    %23 = memref.load %arg4[%c0_5, %c0_6] : memref<1x2xf32, #tpu.memory_space<smem>>
    memref.store %22, %arg4[%c0_5, %c0_6] : memref<1x2xf32, #tpu.memory_space<smem>>
    %c0_7 = arith.constant 0 : index
    %c0_8 = arith.constant 0 : index
    %24 = vector.load %arg2[%c0_7, %c0_8] : memref<1x256xf32, #tpu.memory_space<vmem>>, vector<1x256xf32>
    %25 = vector.broadcast %24 : vector<1x256xf32> to vector<8x256xf32>
    %26 = arith.mulf %15, %25 : vector<8x256xf32>
    %27 = vector.shape_cast %26 : vector<8x256xf32> to vector<1x8x256xf32>
    %cst_9 = arith.constant dense<0.000000e+00> : vector<1xf32>
    %28 = vector.multi_reduction <add>, %27, %cst_9 [1, 2] : vector<1x8x256xf32> to vector<1xf32>
    %29 = vector.shape_cast %28 : vector<1xf32> to vector<1x1x1xf32>
    %30 = vector.extract %29[0, 0, 0] : f32 from vector<1x1x1xf32>
    %c0_10 = arith.constant 0 : index
    %c1 = arith.constant 1 : index
    %31 = memref.load %arg4[%c0_10, %c1] : memref<1x2xf32, #tpu.memory_space<smem>>
    memref.store %30, %arg4[%c0_10, %c1] : memref<1x2xf32, #tpu.memory_space<smem>>
    return
  }
  func.func @transform_0(%arg0: i32) -> (i32, i32) {
    %c0_i32 = arith.constant 0 : i32
    %c0_i32_0 = arith.constant 0 : i32
    %c0_i32_1 = arith.constant 0 : i32
    return %c0_i32, %c0_i32_0 : i32, i32
  }
  func.func @transform_1(%arg0: i32) -> (i32, i32) {
    %c0_i32 = arith.constant 0 : i32
    %c0_i32_0 = arith.constant 0 : i32
    %c0_i32_1 = arith.constant 0 : i32
    return %c0_i32, %c0_i32_0 : i32, i32
  }
  func.func @transform_2(%arg0: i32) -> (i32, i32) {
    %c0_i32 = arith.constant 0 : i32
    %c0_i32_0 = arith.constant 0 : i32
    return %arg0, %c0_i32 : i32, i32
  }
  func.func @transform_3(%arg0: i32) -> (i32, i32) {
    %c0_i32 = arith.constant 0 : i32
    %c0_i32_0 = arith.constant 0 : i32
    return %arg0, %c0_i32 : i32, i32
  }
}

</mosaic_0001>

<llo_original>
// kernel: tpu_custom_call.1
$region0: #{tpu_custom_call.1}
  #allocation0 [shape = 'u32[]', space=smem, size = 0x4, offset = 0x4, fixed_abs, tag = 'smem constant byte address 0x4 - core index']
  #allocation1 [shape = 'u32[144,128]{1,0:T(1,128)}', space=vmem, size = 0x12000, scoped, tag = 'internal scratch']
  %s0 = inlined_call_operand.hbm [shape: f32[1,256], index: 0, kind: input, shape index: {}]
  %s1 = inlined_call_operand.vmem [shape: f32[1,256], index: 1, kind: input, shape index: {}]
  %s2 = inlined_call_operand.hbm [shape: f32[8,256], index: 2, kind: input, shape index: {}]
  %s3 = inlined_call_operand.hbm [shape: f32[1,2], index: 3, kind: output, shape index: {}]
  %s4 = sld [smem:[#allocation0]]
  $region30: #{tpu_custom_call.1} parent=0
    _
  %s6 = ssub.s32 1, %s4
  %s7 = scalar_select 0, %s6, %s4
  $region1: #{tpu_custom_call.1} parent=0
    #allocation2 [shape = 'u8[1024]{0}', space=vmem, size = 0x400, scoped, tag = 'input window, operand 0, single buffered']
    #allocation3 [shape = 's32[1]{0}', space=sflag, size = 0x4, scoped, tag = 'scoped memory for tpu_custom_call.1']
    #allocation4 [shape = 's32[1]{0}', space=sflag, size = 0x4, scoped, tag = 'scoped memory for tpu_custom_call.1']
    #allocation5 [shape = 'u8[8192]{0}', space=vmem, size = 0x2000, scoped, tag = 'input window, operand 2, single buffered']
    #allocation6 [shape = 's32[1]{0}', space=sflag, size = 0x4, scoped, tag = 'scoped memory for tpu_custom_call.1']
    #allocation7 [shape = 'u8[512]{0}', space=smem, size = 0x200, scoped, tag = 'output window, operand 0, single buffered']
    %8 = vsyncpa [#allocation3], 0
    %9 = vsyncpa [#allocation6], 0
    %10 = vsyncpa [#allocation4], 0
    // Predicated region
    $region2: #{tpu_custom_call.1} parent=1 // pred_check
      _
    $region3: #{tpu_custom_call.1} parent=1 // pred_check_branch
      %12 = sbr.rel (0) target = $region5
    $region4: #{tpu_custom_call.1} parent=1 // pred_region
      %s14 = ssub.s32 32, 32
      %15 = vsyncadd [#allocation3], %s14
      %s17 = sshll.u32 [#allocation2], 4
      %s18 = int_to_ptr.vmem [resolvable:$true] %s17
      %20 = dma.hbm_to_vmem [thread:$0]  %s0, 32, %s18, [#allocation3]
    $region5: #{tpu_custom_call.1} parent=1 // pred_fallthru
      _
    // Predicated region
    $region6: #{tpu_custom_call.1} parent=1 // pred_check
      _
    $region7: #{tpu_custom_call.1} parent=1 // pred_check_branch
      %22 = sbr.rel (0) target = $region9
    $region8: #{tpu_custom_call.1} parent=1 // pred_region
      _
    $region9: #{tpu_custom_call.1} parent=1 // pred_fallthru
      _
    // Predicated region
    $region10: #{tpu_custom_call.1} parent=1 // pred_check
      _
    $region11: #{tpu_custom_call.1} parent=1 // pred_check_branch
      %24 = sbr.rel (0) target = $region13
    $region12: #{tpu_custom_call.1} parent=1 // pred_region
      %s26 = ssub.s32 256, 256
      %27 = vsyncadd [#allocation6], %s26
      %s29 = sshll.u32 [#allocation5], 4
      %s30 = int_to_ptr.vmem [resolvable:$true] %s29
      %32 = dma.hbm_to_vmem [thread:$0]  %s2, 256, %s30, [#allocation6]
    $region13: #{tpu_custom_call.1} parent=1 // pred_fallthru
      _
    // Predicated region
    $region14: #{tpu_custom_call.1} parent=1 // pred_check
      _
    $region15: #{tpu_custom_call.1} parent=1 // pred_check_branch
      %34 = sbr.rel (0) target = $region17
    $region16: #{tpu_custom_call.1} parent=1 // pred_region
      %35 = dma.done [#allocation3], 32
    $region17: #{tpu_custom_call.1} parent=1 // pred_fallthru
      _
    // Predicated region
    $region18: #{tpu_custom_call.1} parent=1 // pred_check
      _
    $region19: #{tpu_custom_call.1} parent=1 // pred_check_branch
      %37 = sbr.rel (0) target = $region21
    $region20: #{tpu_custom_call.1} parent=1 // pred_region
      %38 = dma.done [#allocation6], 256
    $region21: #{tpu_custom_call.1} parent=1 // pred_fallthru
      _
    %v39 = vld [vmem:[#allocation5] sm:$0xff]
    %v40 = vld [vmem:[#allocation5 + $0x8] sm:$0xff]
    %s41 = smul.u32 0, 8
    %s42 = ssub.s32 8, %s41
    %v43 = vlaneseq
    %v44 = vshrl.u32 %v43, 7
    %v45 = vstv %s42
    %vm46 = vcmp.lt.s32.totalorder %v44, %v45
    %v47 = vsel %vm46, 1, 0
    %vm48 = vcmp.eq.s32.totalorder %v47, 1
    %v49 = vsel %vm48, %v39, 0.0
    %v50 = vsel %vm48, %v40, 0.0
    %51 = vrot.lane.b32.xlu0 %v49, 127
    %v52 = vpop.permute.xlu0 %51
    %53 = vrot.lane.b32.xlu0 %v50, 127
    %v54 = vpop.permute.xlu0 %53
    %v55 = vlaneseq
    %v56 = vand.u32 %v55, 127
    %vm57 = vcmp.lt.s32.totalorder %v56, 127
    %v58 = vsel %vm57, %v52, %v54
    %v59 = vsel %vm57, %v54, %v52
    %v60 = vsub.f32 %v58, %v49
    %v61 = vsub.f32 %v59, %v50
    %62 = vrot.lane.b32.xlu0 %v49, 112
    %v63 = vpop.permute.xlu0 %62
    %64 = vrot.lane.b32.xlu0 %v50, 112
    %v65 = vpop.permute.xlu0 %64
    %vm66 = vcmp.lt.s32.totalorder %v56, 112
    %v67 = vsel %vm66, %v63, %v65
    %v68 = vsel %vm66, %v65, %v63
    %v69 = vsub.f32 %v67, %v49
    %v70 = vsub.f32 %v68, %v50
    %v71 = vand.u32 2147483647, %v60
    %v72 = vand.u32 2147483647, %v61
    %v73 = vand.u32 2147483647, %v69
    %v74 = vand.u32 2147483647, %v70
    %v75 = vld [vmem:[#allocation2] sm:$0x3]
    %v77 = vlaneseq
    %v78 = vshrl.u32 %v77, 7
    %v79 = vsub.s32 0, %v78
    %v80 = vrot.slane %v75, %v79
    %v81 = vlaneseq
    %v82 = vshrl.u32 %v81, 7
    %v83 = vsub.s32 1, %v82
    %v84 = vrot.slane %v75, %v83
    %v87 = vmul.f32 %v71, %v80
    %v88 = vmul.f32 %v72, %v84
    %v89 = vadd.f32 %v87, %v88
    %90 = vadd.xlane.f32.xlu0 %v89
    %v91 = vpop.xlane.xlu0 %90
    %v92 = vrot.slane %v91, 4
    %v93 = vadd.f32 %v91, %v92
    %v94 = vrot.slane %v93, 2
    %v95 = vadd.f32 %v93, %v94
    %v96 = vrot.slane %v95, 1
    %v97 = vadd.f32 %v95, %v96
    %s98 = vtos %v97
    %s99 = scalar_lea.smem [#allocation7], 0
    %100 = sst [smem:[%s99]] %s98
    %v101 = vld [vmem:[%s1] sm:$0x3]
    %v103 = vlaneseq
    %v104 = vshrl.u32 %v103, 7
    %v105 = vsub.s32 0, %v104
    %v106 = vrot.slane %v101, %v105
    %v107 = vlaneseq
    %v108 = vshrl.u32 %v107, 7
    %v109 = vsub.s32 1, %v108
    %v110 = vrot.slane %v101, %v109
    %v113 = vmul.f32 %v73, %v106
    %v114 = vmul.f32 %v74, %v110
    %v115 = vadd.f32 %v113, %v114
    %116 = vadd.xlane.f32.xlu0 %v115
    %v117 = vpop.xlane.xlu0 %116
    %v118 = vrot.slane %v117, 4
    %v119 = vadd.f32 %v117, %v118
    %v120 = vrot.slane %v119, 2
    %v121 = vadd.f32 %v119, %v120
    %v122 = vrot.slane %v121, 1
    %v123 = vadd.f32 %v121, %v122
    %s124 = vtos %v123
    %s125 = scalar_lea.smem [#allocation7], 1
    %126 = sst [smem:[%s125]] %s124
    // Predicated region
    $region22: #{tpu_custom_call.1} parent=1 // pred_check
      _
    $region23: #{tpu_custom_call.1} parent=1 // pred_check_branch
      %128 = sbr.rel (0) target = $region25
    $region24: #{tpu_custom_call.1} parent=1 // pred_region
      %s130 = ssub.s32 16, 16
      %131 = vsyncadd [#allocation4], %s130
      %134 = dma.smem_to_hbm [#allocation7], 16, %s3, [#allocation4]
    $region25: #{tpu_custom_call.1} parent=1 // pred_fallthru
      _
    // Predicated region
    $region26: #{tpu_custom_call.1} parent=1 // pred_check
      _
    $region27: #{tpu_custom_call.1} parent=1 // pred_check_branch
      %136 = sbr.rel (0) target = $region29
    $region28: #{tpu_custom_call.1} parent=1 // pred_region
      %137 = dma.done [#allocation4], 16
    $region29: #{tpu_custom_call.1} parent=1 // pred_fallthru
      _
    %138 = sfence
    %139 = vsyncpa [#allocation3], 1
    %140 = vsyncpa [#allocation6], 1
    %141 = vsyncpa [#allocation4], 1

</llo_original>
